<compile_context>
chip_gen: v5e
topology: v5e:2x2
jax: 0.10.0
libtpu: 0.0.40
codegen_flags: <defaults>
</compile_context>

<pallas_src>
import functools

import jax
import jax.numpy as jnp
from jax import lax
from jax.experimental import pallas as pl
from jax.experimental.pallas import tpu as pltpu


def _round_up(n, m):
    return (n + m - 1) // m * m


def _mlp_kernel(x_ref, w1_ref, b1_ref, w2sel_ref, c_ref, o_ref, *, pack, out_features):
    """One batch tile of: Linear(in,out) -> Sigmoid -> Linear(out,1).

    x_ref:     (tile_rows, lane_width)     lane_width = pack * in_features
    w1_ref:    (pack*out, lane_width)      block-diagonal replication of w1
    b1_ref:    (pack*out, 1)               f32, b1 tiled `pack` times
    w2sel_ref: (pack, pack*out)            f32, kron(I_pack, 0.5*w2)
    c_ref:     (1,) in SMEM                f32, b2 + 0.5*sum(w2)
    o_ref:     (1, pack, tile_rows)
    """
    xv = x_ref[...]
    w1 = w1_ref[...]

    # h[f, r] = sum_k w1[f, k] * x[r, k]  -> (pack*out, tile_rows), f32 accumulate.
    # Contraction on dim 1 of both operands: no explicit transpose of the x tile.
    h = lax.dot_general(
        w1, xv,
        dimension_numbers=(((1,), (1,)), ((), ())),
        preferred_element_type=jnp.float32,
    )
    h = h + b1_ref[...]                          # broadcast (pack*out, 1)

    # sigmoid(h) = 0.5*tanh(0.5*h) + 0.5; the affine constants are folded into
    # w2sel (= 0.5*w2 per band) and c (= b2 + 0.5*sum(w2)) by the wrapper.
    t = jnp.tanh(0.5 * h)                        # single EUP op, f32

    # Banded (out_features -> 1) projection for all `pack` interleaved batch rows:
    # (pack, pack*out) @ (pack*out, tile_rows) -> (pack, tile_rows), lane dense.
    y = lax.dot_general(
        w2sel_ref[...], t,
        dimension_numbers=(((1,), (0,)), ((), ())),
        preferred_element_type=jnp.float32,
    )
    y = y + c_ref[0]                             # scalar from SMEM

    o_ref[...] = y.astype(o_ref.dtype)[None]


@jax.jit
def mock_module_forward(x, w1, b1, w2, b2):
    """Forward pass of MockModule.

    x:  (B, in_features)
    w1: (out_features, in_features)   torch nn.Linear weight layout
    b1: (out_features,)
    w2: (1, out_features)
    b2: (1,)
    returns (B, 1)
    """
    B, in_features = x.shape
    out_features = w1.shape[0]

    # Lane packing: pack consecutive batch rows so kernel x rows are 128 lanes wide.
    if 0 < in_features <= 128 and 128 % in_features == 0 and B >= 128 // in_features:
        pack = 128 // in_features
    else:
        pack = 1                      # fallback: unpacked layout (still correct)
    lane_width = pack * in_features

    B_main = (B // pack) * pack       # rows handled by the Pallas kernel
    tail = B - B_main                 # < pack leftover rows: plain JAX epilogue
    R = B_main // pack                # packed rows fed to the kernel

    # ---- tile-size selection -------------------------------------------------
    GRAIN = 256
    bytes_per_row = lane_width * x.dtype.itemsize
    # <= 8192 batch rows per tile and <= ~4 MiB of x per tile (double-buffered).
    max_rows = min(max(GRAIN, 8192 // pack), max(GRAIN, (4 << 20) // bytes_per_row))
    max_rows = max(GRAIN, (max_rows // 128) * 128)
    if R <= 2 * GRAIN:
        tile_rows = _round_up(max(R, 1), 128)            # single tile
    else:
        # Balanced, even number of tiles (v7x megacore shards the "parallel" grid
        # axis across its two TensorCores; near-neutral on single-TC v5e/v6e).
        k = 1
        while _round_up(pl.cdiv(R, 2 * k), GRAIN) > max_rows:
            k += 1
        tile_rows = _round_up(pl.cdiv(R, 2 * k), GRAIN)
    tile_rows = max(128, min(tile_rows, max_rows))
    num_tiles = pl.cdiv(R, tile_rows)

    # ---- parameter prep (tiny, per compiled shape) ----------------------------
    # Block-diagonal w1: one (pack*out, lane_width) x (lane_width, tile_rows)
    # matmul computes the first layer for `pack` interleaved batch rows at once.
    w1_bd = jnp.kron(jnp.eye(pack, dtype=w1.dtype), w1).astype(x.dtype)
    b1_bd = jnp.tile(b1.astype(jnp.float32), pack).reshape(pack * out_features, 1)
    w2sel = jnp.kron(jnp.eye(pack, dtype=jnp.float32),
                     0.5 * w2.astype(jnp.float32).reshape(1, out_features))
    c = (b2.astype(jnp.float32).reshape(-1)[:1]
         + 0.5 * jnp.sum(w2.astype(jnp.float32)))        # (1,) scalar for SMEM

    # Kernel input: no jnp.pad copy of x.  A ragged last tile is a Pallas partial
    # edge block; its out-of-range lanes yield garbage outputs sliced off below.
    if pack > 1:
        xk = x[:B_main].reshape(R, lane_width)           # row-major contiguous
    else:
        xk = x

    kernel = functools.partial(_mlp_kernel, pack=pack, out_features=out_features)

    out = pl.pallas_call(
        kernel,
        out_shape=jax.ShapeDtypeStruct((num_tiles, pack, tile_rows), x.dtype),
        grid_spec=pltpu.PrefetchScalarGridSpec(
            num_scalar_prefetch=0,
            grid=(num_tiles,),
            in_specs=[
                pl.BlockSpec((tile_rows, lane_width), lambda i: (i, 0)),            # x tile
                pl.BlockSpec((pack * out_features, lane_width), lambda i: (0, 0)),  # w1 (resident)
                pl.BlockSpec((pack * out_features, 1), lambda i: (0, 0)),           # b1 column
                pl.BlockSpec((pack, pack * out_features), lambda i: (0, 0)),        # 0.5*w2 bands
                pl.BlockSpec(memory_space=pltpu.MemorySpace.SMEM),                  # c scalar
            ],
            out_specs=pl.BlockSpec((1, pack, tile_rows), lambda i: (i, 0, 0)),      # lane-dense
        ),
        compiler_params=pltpu.CompilerParams(
            dimension_semantics=("parallel",),
        ),
    )(xk, w1_bd, b1_bd, w2sel, c)

    # out[i, j, p] = y[batch row i*tile_rows*pack + p*pack + j]; restore batch order
    # with a cheap transpose/reshape of the tiny output, then drop garbage lanes.
    y_main = jnp.transpose(out, (0, 2, 1)).reshape(-1)[:B_main]

    if tail:
        # < pack leftover rows: trivial plain-JAX epilogue (avoids padding/copying x).
        x_t = x[B_main:].astype(jnp.float32)
        h_t = x_t @ w1.astype(jnp.float32).T + b1.astype(jnp.float32)
        y_t = jax.nn.sigmoid(h_t) @ w2.astype(jnp.float32).T + b2.astype(jnp.float32)
        y_main = jnp.concatenate([y_main, y_t.reshape(-1).astype(y_main.dtype)])

    return y_main.reshape(B, 1)


def _reference(x, w1, b1, w2, b2):
    hp = jax.lax.Precision.HIGHEST
    h = jnp.einsum("bi,oi->bo", x, w1, precision=hp) + b1
    a = jax.nn.sigmoid(h)
    return jnp.einsum("bo,uo->bu", a, w2, precision=hp) + b2


if __name__ == "__main__":
    key = jax.random.PRNGKey(0)

    def make_params(k, in_features, out_features):
        k_w1, k_b1, k_w2, k_b2 = jax.random.split(k, 4)
        bound1 = 1.0 / (in_features ** 0.5)
        bound2 = 1.0 / (out_features ** 0.5)
        w1 = jax.random.uniform(k_w1, (out_features, in_features), jnp.float32, -bound1, bound1)
        b1 = jax.random.uniform(k_b1, (out_features,), jnp.float32, -bound1, bound1)
        w2 = jax.random.uniform(k_w2, (1, out_features), jnp.float32, -bound2, bound2)
        b2 = jax.random.uniform(k_b2, (1,), jnp.float32, -bound2, bound2)
        return w1, b1, w2, b2

    k_p, k_x1, k_x2, k_p3, k_x3 = jax.random.split(key, 5)

    # Primary small case: batch=8, in_features=32, out_features=16 (packed, 1 tile).
    in_f, out_f = 32, 16
    w1, b1, w2, b2 = make_params(k_p, in_f, out_f)
    x = jax.random.normal(k_x1, (8, in_f), jnp.float32)
    out = jax.block_until_ready(mock_module_forward(x, w1, b1, w2, b2))
    ref = _reference(x, w1, b1, w2, b2)
    assert out.shape == (8, 1)
    assert jnp.allclose(out, ref, atol=1e-5, rtol=1e-5)

    # Multi-tile + ragged edge block + (< pack)-row tail.
    x2 = jax.random.normal(k_x2, (2501, in_f), jnp.float32)
    out2 = jax.block_until_ready(mock_module_forward(x2, w1, b1, w2, b2))
    ref2 = _reference(x2, w1, b1, w2, b2)
    assert out2.shape == (2501, 1)
    assert jnp.allclose(out2, ref2, atol=1e-5, rtol=1e-5)

    # Fallback (unpacked) path: in_features does not divide 128.
    in_f3, out_f3 = 24, 16
    w1c, b1c, w2c, b2c = make_params(k_p3, in_f3, out_f3)
    x3 = jax.random.normal(k_x3, (300, in_f3), jnp.float32)
    out3 = jax.block_until_ready(mock_module_forward(x3, w1c, b1c, w2c, b2c))
    ref3 = _reference(x3, w1c, b1c, w2c, b2c)
    assert out3.shape == (300, 1)
    assert jnp.allclose(out3, ref3, atol=1e-5, rtol=1e-5)

    print("KERNEL_OK")
</pallas_src>

<mosaic_0001>
module attributes {stable_mosaic.version = 11 : i64} {
  func.func @_mlp_kernel(%arg0: i32, %arg1: memref<128x128xf32, #tpu.memory_space<vmem>>, %arg2: memref<64x128xf32, #tpu.memory_space<vmem>>, %arg3: memref<64x1xf32, #tpu.memory_space<vmem>>, %arg4: memref<4x64xf32, #tpu.memory_space<vmem>>, %arg5: memref<1xf32, #tpu.memory_space<smem>>, %arg6: memref<1x4x128xf32, #tpu.memory_space<vmem>>) attributes {dimension_semantics = [#tpu.dimension_semantics<parallel>], iteration_bounds = array<i64: 1>, scalar_prefetch = 0 : i64, scratch_operands = 0 : i64, tpu.core_type = #tpu.core_type<tc>, window_params = [{transform_indices = @transform_0, window_bounds = array<i64: 128, 128>}, {pipeline_mode = #tpu.pipeline_mode<synchronous>, transform_indices = @transform_1, window_bounds = array<i64: 64, 128>}, {pipeline_mode = #tpu.pipeline_mode<synchronous>, transform_indices = @transform_2, window_bounds = array<i64: 64, 1>}, {pipeline_mode = #tpu.pipeline_mode<synchronous>, transform_indices = @transform_3, window_bounds = array<i64: 4, 64>}, {transform_indices = @transform_4, window_bounds = array<i64: 1>}, {transform_indices = @transform_5, window_bounds = array<i64: 1, 4, 128>}]} {
    %c0 = arith.constant 0 : index
    %c0_0 = arith.constant 0 : index
    %0 = vector.load %arg1[%c0, %c0_0] : memref<128x128xf32, #tpu.memory_space<vmem>>, vector<128x128xf32>
    %c0_1 = arith.constant 0 : index
    %c0_2 = arith.constant 0 : index
    %1 = vector.load %arg2[%c0_1, %c0_2] : memref<64x128xf32, #tpu.memory_space<vmem>>, vector<64x128xf32>
    %cst = arith.constant dense<0.000000e+00> : vector<64x128xf32>
    %2 = tpu.matmul %1, %0, %cst {dimension_numbers = #tpu.dot_dimension_numbers<[1], [1], [0], [0], [0, 0, 1, 0], [], []>} : vector<64x128xf32>, vector<128x128xf32>, vector<64x128xf32> -> vector<64x128xf32>
    %c0_3 = arith.constant 0 : index
    %c0_4 = arith.constant 0 : index
    %3 = vector.load %arg3[%c0_3, %c0_4] : memref<64x1xf32, #tpu.memory_space<vmem>>, vector<64x1xf32>
    %4 = vector.broadcast %3 : vector<64x1xf32> to vector<64x128xf32>
    %5 = arith.addf %2, %4 : vector<64x128xf32>
    %cst_5 = arith.constant 5.000000e-01 : f32
    %6 = vector.broadcast %cst_5 : f32 to vector<64x128xf32>
    %7 = arith.mulf %6, %5 : vector<64x128xf32>
    %8 = math.tanh %7 : vector<64x128xf32>
    %c0_6 = arith.constant 0 : index
    %c0_7 = arith.constant 0 : index
    %9 = vector.load %arg4[%c0_6, %c0_7] : memref<4x64xf32, #tpu.memory_space<vmem>>, vector<4x64xf32>
    %cst_8 = arith.constant dense<0.000000e+00> : vector<4x128xf32>
    %10 = tpu.matmul %9, %8, %cst_8 {dimension_numbers = #tpu.dot_dimension_numbers<[1], [0], [0], [1], [0, 0, 1, 1], [], []>} : vector<4x64xf32>, vector<64x128xf32>, vector<4x128xf32> -> vector<4x128xf32>
    %c0_9 = arith.constant 0 : index
    %11 = memref.load %arg5[%c0_9] : memref<1xf32, #tpu.memory_space<smem>>
    %12 = vector.broadcast %11 : f32 to vector<4x128xf32>
    %13 = arith.addf %10, %12 : vector<4x128xf32>
    %14 = vector.shape_cast %13 : vector<4x128xf32> to vector<1x4x128xf32>
    %c0_10 = arith.constant 0 : index
    %c0_11 = arith.constant 0 : index
    %c0_12 = arith.constant 0 : index
    %15 = vector.load %arg6[%c0_10, %c0_11, %c0_12] : memref<1x4x128xf32, #tpu.memory_space<vmem>>, vector<1x4x128xf32>
    tpu.vector_store %arg6[%c0_10, %c0_11, %c0_12], %14 {strides = array<i32>} : memref<1x4x128xf32, #tpu.memory_space<vmem>>, vector<1x4x128xf32>,
    return
  }
  func.func @transform_0(%arg0: i32) -> (i32, i32) {
    %c0_i32 = arith.constant 0 : i32
    %c0_i32_0 = arith.constant 0 : i32
    return %arg0, %c0_i32 : i32, i32
  }
  func.func @transform_1(%arg0: i32) -> (i32, i32) {
    %c0_i32 = arith.constant 0 : i32
    %c0_i32_0 = arith.constant 0 : i32
    %c0_i32_1 = arith.constant 0 : i32
    return %c0_i32, %c0_i32_0 : i32, i32
  }
  func.func @transform_2(%arg0: i32) -> (i32, i32) {
    %c0_i32 = arith.constant 0 : i32
    %c0_i32_0 = arith.constant 0 : i32
    %c0_i32_1 = arith.constant 0 : i32
    return %c0_i32, %c0_i32_0 : i32, i32
  }
  func.func @transform_3(%arg0: i32) -> (i32, i32) {
    %c0_i32 = arith.constant 0 : i32
    %c0_i32_0 = arith.constant 0 : i32
    %c0_i32_1 = arith.constant 0 : i32
    return %c0_i32, %c0_i32_0 : i32, i32
  }
  func.func @transform_4(%arg0: i32) -> i32 {
    %c0_i32 = arith.constant 0 : i32
    %c0_i32_0 = arith.constant 0 : i32
    return %c0_i32 : i32
  }
  func.func @transform_5(%arg0: i32) -> (i32, i32, i32) {
    %c0_i32 = arith.constant 0 : i32
    %c0_i32_0 = arith.constant 0 : i32
    %c0_i32_1 = arith.constant 0 : i32
    return %arg0, %c0_i32, %c0_i32_0 : i32, i32, i32
  }
}

</mosaic_0001>

<llo_original>
// kernel: tile.0
$region0: #{tile.0}
  %s0 = inlined_call_operand.vmem [shape: f32[4,16], index: 0, kind: input, shape index: {}]
  %s1 = inlined_call_operand.vmem [shape: f32[64,1], index: 1, kind: output, shape index: {}]
  $region1: #{tile.0} parent=0
    #allocation0 [shape = 'u8[4096]{0}', space=vmem, size = 0x1000, scoped, tag = 'scoped mem for input reshape']
    %s3 = ssub.s32 16, 1
    %v4 = vld [vmem:[%s0] sm:%s3]
    %5 = vst [vmem:[#allocation0] sm:%s3] %v4
    %v6 = vld [vmem:[#allocation0] sm:$0xf]
    %vm7 = vcmask 7168
    %8 = vst.msk [vmem:[%s1] ss:$16 sm:$0x3] %vm7, %v6
    %9 = vst.msk [vmem:[%s1] ss:$16 sm:$0xc] %vm7, %v6
    %v10 = vld [vmem:[#allocation0] sm:$0xf]
    %11 = vrot.lane.b32.xlu0 %v10, 127
    %v12 = vpop.permute.xlu0 %11
    %vm13 = vcmask 7168
    %s14 = scalar_lea.vmem %s1, 1
    %15 = vst.msk [vmem:[%s14] ss:$16 sm:$0x3] %vm13, %v12
    %s16 = scalar_lea.vmem %s1, 1
    %17 = vst.msk [vmem:[%s16] ss:$16 sm:$0xc] %vm13, %v12
    %v18 = vld [vmem:[#allocation0] sm:$0xf]
    %19 = vrot.lane.b32.xlu0 %v18, 126
    %v20 = vpop.permute.xlu0 %19
    %vm21 = vcmask 7168
    %s22 = scalar_lea.vmem %s1, 2
    %23 = vst.msk [vmem:[%s22] ss:$16 sm:$0x3] %vm21, %v20
    %s24 = scalar_lea.vmem %s1, 2
    %25 = vst.msk [vmem:[%s24] ss:$16 sm:$0xc] %vm21, %v20
    %v26 = vld [vmem:[#allocation0] sm:$0xf]
    %27 = vrot.lane.b32.xlu0 %v26, 125
    %v28 = vpop.permute.xlu0 %27
    %vm29 = vcmask 7168
    %s30 = scalar_lea.vmem %s1, 3
    %31 = vst.msk [vmem:[%s30] ss:$16 sm:$0x3] %vm29, %v28
    %s32 = scalar_lea.vmem %s1, 3
    %33 = vst.msk [vmem:[%s32] ss:$16 sm:$0xc] %vm29, %v28
    %v34 = vld [vmem:[#allocation0] sm:$0xf]
    %35 = vrot.lane.b32.xlu0 %v34, 124
    %v36 = vpop.permute.xlu0 %35
    %vm37 = vcmask 7168
    %s38 = scalar_lea.vmem %s1, 4
    %39 = vst.msk [vmem:[%s38] ss:$16 sm:$0x3] %vm37, %v36
    %s40 = scalar_lea.vmem %s1, 4
    %41 = vst.msk [vmem:[%s40] ss:$16 sm:$0xc] %vm37, %v36
    %v42 = vld [vmem:[#allocation0] sm:$0xf]
    %43 = vrot.lane.b32.xlu0 %v42, 123
    %v44 = vpop.permute.xlu0 %43
    %vm45 = vcmask 7168
    %s46 = scalar_lea.vmem %s1, 5
    %47 = vst.msk [vmem:[%s46] ss:$16 sm:$0x3] %vm45, %v44
    %s48 = scalar_lea.vmem %s1, 5
    %49 = vst.msk [vmem:[%s48] ss:$16 sm:$0xc] %vm45, %v44
    %v50 = vld [vmem:[#allocation0] sm:$0xf]
    %51 = vrot.lane.b32.xlu0 %v50, 122
    %v52 = vpop.permute.xlu0 %51
    %vm53 = vcmask 7168
    %s54 = scalar_lea.vmem %s1, 6
    %55 = vst.msk [vmem:[%s54] ss:$16 sm:$0x3] %vm53, %v52
    %s56 = scalar_lea.vmem %s1, 6
    %57 = vst.msk [vmem:[%s56] ss:$16 sm:$0xc] %vm53, %v52
    %v58 = vld [vmem:[#allocation0] sm:$0xf]
    %59 = vrot.lane.b32.xlu0 %v58, 121
    %v60 = vpop.permute.xlu0 %59
    %vm61 = vcmask 7168
    %s62 = scalar_lea.vmem %s1, 7
    %63 = vst.msk [vmem:[%s62] ss:$16 sm:$0x3] %vm61, %v60
    %s64 = scalar_lea.vmem %s1, 7
    %65 = vst.msk [vmem:[%s64] ss:$16 sm:$0xc] %vm61, %v60
    %v66 = vld [vmem:[#allocation0] sm:$0xf]
    %67 = vrot.lane.b32.xlu0 %v66, 120
    %v68 = vpop.permute.xlu0 %67
    %vm69 = vcmask 7168
    %s70 = scalar_lea.vmem %s1, 8
    %71 = vst.msk [vmem:[%s70] ss:$16 sm:$0x3] %vm69, %v68
    %s72 = scalar_lea.vmem %s1, 8
    %73 = vst.msk [vmem:[%s72] ss:$16 sm:$0xc] %vm69, %v68
    %v74 = vld [vmem:[#allocation0] sm:$0xf]
    %75 = vrot.lane.b32.xlu0 %v74, 119
    %v76 = vpop.permute.xlu0 %75
    %vm77 = vcmask 7168
    %s78 = scalar_lea.vmem %s1, 9
    %79 = vst.msk [vmem:[%s78] ss:$16 sm:$0x3] %vm77, %v76
    %s80 = scalar_lea.vmem %s1, 9
    %81 = vst.msk [vmem:[%s80] ss:$16 sm:$0xc] %vm77, %v76
    %v82 = vld [vmem:[#allocation0] sm:$0xf]
    %83 = vrot.lane.b32.xlu0 %v82, 118
    %v84 = vpop.permute.xlu0 %83
    %vm85 = vcmask 7168
    %s86 = scalar_lea.vmem %s1, 10
    %87 = vst.msk [vmem:[%s86] ss:$16 sm:$0x3] %vm85, %v84
    %s88 = scalar_lea.vmem %s1, 10
    %89 = vst.msk [vmem:[%s88] ss:$16 sm:$0xc] %vm85, %v84
    %v90 = vld [vmem:[#allocation0] sm:$0xf]
    %91 = vrot.lane.b32.xlu0 %v90, 117
    %v92 = vpop.permute.xlu0 %91
    %vm93 = vcmask 7168
    %s94 = scalar_lea.vmem %s1, 11
    %95 = vst.msk [vmem:[%s94] ss:$16 sm:$0x3] %vm93, %v92
    %s96 = scalar_lea.vmem %s1, 11
    %97 = vst.msk [vmem:[%s96] ss:$16 sm:$0xc] %vm93, %v92
    %v98 = vld [vmem:[#allocation0] sm:$0xf]
    %99 = vrot.lane.b32.xlu0 %v98, 116
    %v100 = vpop.permute.xlu0 %99
    %vm101 = vcmask 7168
    %s102 = scalar_lea.vmem %s1, 12
    %103 = vst.msk [vmem:[%s102] ss:$16 sm:$0x3] %vm101, %v100
    %s104 = scalar_lea.vmem %s1, 12
    %105 = vst.msk [vmem:[%s104] ss:$16 sm:$0xc] %vm101, %v100
    %v106 = vld [vmem:[#allocation0] sm:$0xf]
    %107 = vrot.lane.b32.xlu0 %v106, 115
    %v108 = vpop.permute.xlu0 %107
    %vm109 = vcmask 7168
    %s110 = scalar_lea.vmem %s1, 13
    %111 = vst.msk [vmem:[%s110] ss:$16 sm:$0x3] %vm109, %v108
    %s112 = scalar_lea.vmem %s1, 13
    %113 = vst.msk [vmem:[%s112] ss:$16 sm:$0xc] %vm109, %v108
    %v114 = vld [vmem:[#allocation0] sm:$0xf]
    %115 = vrot.lane.b32.xlu0 %v114, 114
    %v116 = vpop.permute.xlu0 %115
    %vm117 = vcmask 7168
    %s118 = scalar_lea.vmem %s1, 14
    %119 = vst.msk [vmem:[%s118] ss:$16 sm:$0x3] %vm117, %v116
    %s120 = scalar_lea.vmem %s1, 14
    %121 = vst.msk [vmem:[%s120] ss:$16 sm:$0xc] %vm117, %v116
    %v122 = vld [vmem:[#allocation0] sm:$0xf]
    %123 = vrot.lane.b32.xlu0 %v122, 113
    %v124 = vpop.permute.xlu0 %123
    %vm125 = vcmask 7168
    %s126 = scalar_lea.vmem %s1, 15
    %127 = vst.msk [vmem:[%s126] ss:$16 sm:$0x3] %vm125, %v124
    %s128 = scalar_lea.vmem %s1, 15
    %129 = vst.msk [vmem:[%s128] ss:$16 sm:$0xc] %vm125, %v124

// kernel: mock_module_forward.1
$region0: #{mock_module_forward.1}
  #allocation0 [shape = 'u32[]', space=smem, size = 0x4, offset = 0x4, fixed_abs, tag = 'smem constant byte address 0x4 - core index']
  #allocation1 [shape = 'u32[72,128]{1,0:T(1,128)}', space=vmem, size = 0x9000, scoped, tag = 'internal scratch']
  #allocation2 [shape = 'f32[1]{0:T(128)S(6)}', space=smem, size = 0x200, scoped, tag = 'scoped memory for mock_module_forward.1']
  %s0 = inlined_call_operand.vmem [shape: f32[2,128], index: 0, kind: input, shape index: {}]
  %s1 = inlined_call_operand.vmem [shape: f32[64,128], index: 1, kind: input, shape index: {}]
  %s2 = inlined_call_operand.vmem [shape: f32[64,1], index: 2, kind: input, shape index: {}]
  %s3 = inlined_call_operand.vmem [shape: f32[4,64], index: 3, kind: input, shape index: {}]
  %s4 = inlined_call_operand.<no memory space> [shape: f32[1], index: 4, kind: input, shape index: {}]
  %s5 = inlined_call_operand.vmem [shape: f32[1,4,128], index: 5, kind: output, shape index: {}]
  %s6 = sld [smem:[#allocation0]]
  $region30: #{mock_module_forward.1} parent=0
    _
  %s8 = ssub.s32 1, %s6
  %s9 = scalar_select 0, %s8, %s6
  %10 = sst [smem:[#allocation2]] %s4
  // Predicated region
  $region2: #{mock_module_forward.1} parent=0 // pred_check
    _
  $region3: #{mock_module_forward.1} parent=0 // pred_check_branch
    %12 = sbr.rel (0) target = $region5
  $region4: #{mock_module_forward.1} parent=0 // pred_region
    _
  $region5: #{mock_module_forward.1} parent=0 // pred_fallthru
    _
  // Predicated region
  $region6: #{mock_module_forward.1} parent=0 // pred_check
    _
  $region7: #{mock_module_forward.1} parent=0 // pred_check_branch
    %14 = sbr.rel (0) target = $region9
  $region8: #{mock_module_forward.1} parent=0 // pred_region
    _
  $region9: #{mock_module_forward.1} parent=0 // pred_fallthru
    _
  // Predicated region
  $region10: #{mock_module_forward.1} parent=0 // pred_check
    _
  $region11: #{mock_module_forward.1} parent=0 // pred_check_branch
    %16 = sbr.rel (0) target = $region13
  $region12: #{mock_module_forward.1} parent=0 // pred_region
    _
  $region13: #{mock_module_forward.1} parent=0 // pred_fallthru
    _
  // Predicated region
  $region14: #{mock_module_forward.1} parent=0 // pred_check
    _
  $region15: #{mock_module_forward.1} parent=0 // pred_check_branch
    %18 = sbr.rel (0) target = $region17
  $region16: #{mock_module_forward.1} parent=0 // pred_region
    _
  $region17: #{mock_module_forward.1} parent=0 // pred_fallthru
    _
  // Predicated region
  $region18: #{mock_module_forward.1} parent=0 // pred_check
    _
  $region19: #{mock_module_forward.1} parent=0 // pred_check_branch
    %20 = sbr.rel (0) target = $region21
  $region20: #{mock_module_forward.1} parent=0 // pred_region
    _
  $region21: #{mock_module_forward.1} parent=0 // pred_fallthru
    _
  %v21 = vld [vmem:[%s0] sm:$0xff]
  %v22 = vld [vmem:[%s0 + $0x8] sm:$0xff]
  %v23 = vld [vmem:[%s0 + $0x10] sm:$0xff]
  %v24 = vld [vmem:[%s0 + $0x18] sm:$0xff]
  %v25 = vld [vmem:[%s0 + $0x20] sm:$0xff]
  %v26 = vld [vmem:[%s0 + $0x28] sm:$0xff]
  %v27 = vld [vmem:[%s0 + $0x30] sm:$0xff]
  %v28 = vld [vmem:[%s0 + $0x38] sm:$0xff]
  %v29 = vld [vmem:[%s0 + $0x40] sm:$0xff]
  %v30 = vld [vmem:[%s0 + $0x48] sm:$0xff]
  %v31 = vld [vmem:[%s0 + $0x50] sm:$0xff]
  %v32 = vld [vmem:[%s0 + $0x58] sm:$0xff]
  %v33 = vld [vmem:[%s0 + $0x60] sm:$0xff]
  %v34 = vld [vmem:[%s0 + $0x68] sm:$0xff]
  %v35 = vld [vmem:[%s0 + $0x70] sm:$0xff]
  %v36 = vld [vmem:[%s0 + $0x78] sm:$0xff]
  %v37 = vld [vmem:[%s1] sm:$0xff]
  %v38 = vld [vmem:[%s1 + $0x8] sm:$0xff]
  %v39 = vld [vmem:[%s1 + $0x10] sm:$0xff]
  %v40 = vld [vmem:[%s1 + $0x18] sm:$0xff]
  %v41 = vld [vmem:[%s1 + $0x20] sm:$0xff]
  %v42 = vld [vmem:[%s1 + $0x28] sm:$0xff]
  %v43 = vld [vmem:[%s1 + $0x30] sm:$0xff]
  %v44 = vld [vmem:[%s1 + $0x38] sm:$0xff]
  %v45 = vld [vmem:[%s2] sm:$0xff]
  %v46 = vld [vmem:[%s2 + $0x8] sm:$0xff]
  %v47 = vld [vmem:[%s2 + $0x10] sm:$0xff]
  %v48 = vld [vmem:[%s2 + $0x18] sm:$0xff]
  %v49 = vld [vmem:[%s2 + $0x20] sm:$0xff]
  %v50 = vld [vmem:[%s2 + $0x28] sm:$0xff]
  %v51 = vld [vmem:[%s2 + $0x30] sm:$0xff]
  %v52 = vld [vmem:[%s2 + $0x38] sm:$0xff]
  %54 = vset.pattern.permute.xlu0 0
  %55 = vperm.xlu0 %54, %v45
  %v56 = vpop.permute.xlu0 %55
  %59 = vset.pattern.permute.xlu0 0
  %60 = vperm.xlu0 %59, %v46
  %v61 = vpop.permute.xlu0 %60
  %64 = vset.pattern.permute.xlu0 0
  %65 = vperm.xlu0 %64, %v47
  %v66 = vpop.permute.xlu0 %65
  %69 = vset.pattern.permute.xlu0 0
  %70 = vperm.xlu0 %69, %v48
  %v71 = vpop.permute.xlu0 %70
  %74 = vset.pattern.permute.xlu0 0
  %75 = vperm.xlu0 %74, %v49
  %v76 = vpop.permute.xlu0 %75
  %79 = vset.pattern.permute.xlu0 0
  %80 = vperm.xlu0 %79, %v50
  %v81 = vpop.permute.xlu0 %80
  %84 = vset.pattern.permute.xlu0 0
  %85 = vperm.xlu0 %84, %v51
  %v86 = vpop.permute.xlu0 %85
  %89 = vset.pattern.permute.xlu0 0
  %90 = vperm.xlu0 %89, %v52
  %v91 = vpop.permute.xlu0 %90
  %93 = vmatpush.xpose.msra.mxu0 %v36
  %94 = vmatpush.xpose.msra.mxu0 %v35
  %95 = vmatpush.xpose.msra.mxu0 %v34
  %96 = vmatpush.xpose.msra.mxu0 %v33
  %97 = vmatpush.xpose.msra.mxu0 %v32
  %98 = vmatpush.xpose.msra.mxu0 %v31
  %99 = vmatpush.xpose.msra.mxu0 %v30
  %100 = vmatpush.xpose.msra.mxu0 %v29
  %101 = vmatpush.xpose.msra.mxu0 %v28
  %102 = vmatpush.xpose.msra.mxu0 %v27
  %103 = vmatpush.xpose.msra.mxu0 %v26
  %104 = vmatpush.xpose.msra.mxu0 %v25
  %105 = vmatpush.xpose.msra.mxu0 %v24
  %106 = vmatpush.xpose.msra.mxu0 %v23
  %107 = vmatpush.xpose.msra.mxu0 %v22
  %108 = vmatpush.xpose.msra.mxu0 %v21
  %109 = vmatmul.f32.gmra.mxu0 %v37
  %v110 = vpop.f32.mrf.mxu0
  %v111 = vadd.f32 %v56, %v110
  %112 = vmatmul.f32.gmra.mxu0 %v38
  %v113 = vpop.f32.mrf.mxu0
  %v114 = vadd.f32 %v61, %v113
  %115 = vmatmul.f32.gmra.mxu0 %v39
  %v116 = vpop.f32.mrf.mxu0
  %v117 = vadd.f32 %v66, %v116
  %118 = vmatmul.f32.gmra.mxu0 %v40
  %v119 = vpop.f32.mrf.mxu0
  %v120 = vadd.f32 %v71, %v119
  %121 = vmatmul.f32.gmra.mxu0 %v41
  %v122 = vpop.f32.mrf.mxu0
  %v123 = vadd.f32 %v76, %v122
  %124 = vmatmul.f32.gmra.mxu0 %v42
  %v125 = vpop.f32.mrf.mxu0
  %v126 = vadd.f32 %v81, %v125
  %127 = vmatmul.f32.gmra.mxu0 %v43
  %v128 = vpop.f32.mrf.mxu0
  %v129 = vadd.f32 %v86, %v128
  %130 = vmatmul.f32.gmra.mxu0 %v44
  %v131 = vpop.f32.mrf.mxu0
  %v132 = vadd.f32 %v91, %v131
  %133 = vdwg.mxu0
  %v134 = vmul.f32 %v111, 0.5
  %v135 = vmul.f32 %v114, 0.5
  %v136 = vmul.f32 %v117, 0.5
  %v137 = vmul.f32 %v120, 0.5
  %v138 = vmul.f32 %v123, 0.5
  %v139 = vmul.f32 %v126, 0.5
  %v140 = vmul.f32 %v129, 0.5
  %v141 = vmul.f32 %v132, 0.5
  %v142 = vtanh.pop %v134
  %v143 = vtanh.pop %v135
  %v144 = vtanh.pop %v136
  %v145 = vtanh.pop %v137
  %v146 = vtanh.pop %v138
  %v147 = vtanh.pop %v139
  %v148 = vtanh.pop %v140
  %v149 = vtanh.pop %v141
  %v150 = vld [vmem:[%s3] sm:$0xf]
  %s151 = sld [smem:[#allocation2]]
  %v152 = vstv %s151
  %vm153 = vcmask 523264
  %v155 = vsel %vm153, %v150, 0
  %157 = vmatpush.msra.mxu0 0.0
  %158 = vmatpush.msra.mxu0 0.0
  %159 = vmatpush.msra.mxu0 0.0
  %160 = vmatpush.msra.mxu0 0.0
  %161 = vmatpush.msra.mxu0 0.0
  %162 = vmatpush.msra.mxu0 0.0
  %163 = vmatpush.msra.mxu0 0.0
  %164 = vmatpush.msra.mxu0 0.0
  %165 = vmatpush.msra.mxu0 %v149
  %166 = vmatpush.msra.mxu0 %v148
  %167 = vmatpush.msra.mxu0 %v147
  %168 = vmatpush.msra.mxu0 %v146
  %169 = vmatpush.msra.mxu0 %v145
  %170 = vmatpush.msra.mxu0 %v144
  %171 = vmatpush.msra.mxu0 %v143
  %172 = vmatpush.msra.mxu0 %v142
  %173 = vmatmul.f32.gmra.mxu0 %v155
  %v174 = vpop.f32.mrf.mxu0
  %v175 = vadd.f32 %v152, %v174
  %176 = vdwg.mxu0
  %177 = vst [vmem:[%s5] sm:$0xf] %v175
  // Predicated region
  $region22: #{mock_module_forward.1} parent=0 // pred_check
    _
  $region23: #{mock_module_forward.1} parent=0 // pred_check_branch
    %179 = sbr.rel (0) target = $region25
  $region24: #{mock_module_forward.1} parent=0 // pred_region
    _
  $region25: #{mock_module_forward.1} parent=0 // pred_fallthru
    _
  // Predicated region
  $region26: #{mock_module_forward.1} parent=0 // pred_check
    _
  $region27: #{mock_module_forward.1} parent=0 // pred_check_branch
    %181 = sbr.rel (0) target = $region29
  $region28: #{mock_module_forward.1} parent=0 // pred_region
    _
  $region29: #{mock_module_forward.1} parent=0 // pred_fallthru
    _

</llo_original>
